<compile_context>
chip_gen: v7x
topology: tpu7x:2x2x1
jax: 0.10.0
libtpu: 0.0.40
codegen_flags: <defaults>
</compile_context>

<pallas_src>
import jax
import jax.numpy as jnp
from jax.experimental import pallas as pl
from jax.experimental.pallas import tpu as pltpu

ACT_DTYPE = jnp.bfloat16   # spikes are {0,1} -> exact in bf16
WGT_DTYPE = jnp.bfloat16   # folded conv+BN weights feed the bf16 MXU path


def _round_up(x, m):
    return (x + m - 1) // m * m


# ---------------------------------------------------------------------------
# Layout helpers: PyTorch/SpikingJelly [T, N, C, H, W]  <->  (C, N*T*H*W)
# Lane order is (n, t, h, w) so a contiguous lane block of k*T*H*W lanes holds
# whole samples for all time steps (needed for the parallel sample-block axis).
# ---------------------------------------------------------------------------
def to_lane_layout(x_tnchw, cin_pad=None, dtype=ACT_DTYPE):
    T, N, C, H, W = x_tnchw.shape
    x = jnp.transpose(x_tnchw, (2, 1, 0, 3, 4)).reshape(C, N * T * H * W)
    if cin_pad is not None and cin_pad > C:
        x = jnp.pad(x, ((0, cin_pad - C), (0, 0)))
    # NOTE: network inputs must be bf16-exact (binary spikes are).
    return x.astype(dtype)


def from_lane_layout(x_cl, *, N, T, H, W):
    C = x_cl.shape[0]
    return jnp.transpose(x_cl.reshape(C, N, T, H, W), (2, 1, 0, 3, 4))


def _make_tap_masks(H, W, total_lanes):
    """(9, total_lanes) f32 validity masks for the 3x3 taps (zero padding).
    Valid for any lane flattening with (h, w) innermost (period H*W)."""
    HW = H * W
    p = jnp.arange(total_lanes)
    h = (p % HW) // W
    w = p % W
    rows = []
    for kh in range(3):
        for kw in range(3):
            dh, dw = kh - 1, kw - 1
            ok = (h + dh >= 0) & (h + dh < H) & (w + dw >= 0) & (w + dw < W)
            rows.append(ok.astype(jnp.float32))
    return jnp.stack(rows, axis=0)


_ROLL_IS_JNP_LIKE = None


def _roll_is_jnp_like():
    """One-time probe (outside jit): pltpu.roll is expected to match jnp.roll
    (result[i] = x[(i - shift) % n]); verify once so tap shifts use the right
    sign regardless of the exact rotate convention."""
    global _ROLL_IS_JNP_LIKE
    if _ROLL_IS_JNP_LIKE is None:
        def probe(x_ref, o_ref):
            o_ref[...] = pltpu.roll(x_ref[...], 1, axis=1)

        x = jnp.arange(8 * 128, dtype=jnp.float32).reshape(8, 128)
        y = pl.pallas_call(
            probe, out_shape=jax.ShapeDtypeStruct((8, 128), jnp.float32))(x)
        _ROLL_IS_JNP_LIKE = bool(jnp.array_equal(y, jnp.roll(x, 1, axis=1)))
    return _ROLL_IS_JNP_LIKE


def _tap_shifts(W, period, jnp_like=True):
    """Lane-roll amount per 3x3 tap so rolled[p] = x[p + d], d=(kh-1)*W+(kw-1)."""
    shifts = []
    for kh in range(3):
        for kw in range(3):
            d = (kh - 1) * W + (kw - 1)
            shifts.append(((-d) % period) if jnp_like else (d % period))
    return tuple(shifts)


def _fold_conv_bn(w, gamma, beta, mean, var, *, cin_pad, gates=None,
                  dtype=WGT_DTYPE, eps=1e-5):
    """conv3x3 weight (3,3,Cin,Cout) + inference BatchNorm (running stats) and
    optional per-edge sigmoid gates (edge inputs concatenated along Cin) ->
        w3d  (9, Cout, n_edges*cin_pad)   tap-major, [edge, channel] inner
        bias (Cout, 1) f32
    """
    kh, kw, cin, cout = w.shape
    scale = gamma / jnp.sqrt(var + eps)                      # (Cout,)
    bias = beta - mean * scale                               # (Cout,)
    w_t = jnp.transpose(w, (3, 0, 1, 2))                     # (Cout,3,3,Cin)
    if cin_pad > cin:
        w_t = jnp.pad(w_t, ((0, 0), (0, 0), (0, 0), (0, cin_pad - cin)))
    if gates is None:
        gates = jnp.ones((1,), jnp.float32)
    w_g = (w_t[:, :, :, None, :]
           * scale[:, None, None, None, None]
           * gates[None, None, None, :, None])               # (Cout,3,3,E,Cin_p)
    n_edges = gates.shape[0]
    w3d = jnp.transpose(w_g, (1, 2, 0, 3, 4)).reshape(
        kh * kw, cout, n_edges * cin_pad)
    return w3d.astype(dtype), bias[:, None].astype(jnp.float32)


# ---------------------------------------------------------------------------
# Fused Node kernel: conv1(+BN) -> PLIF1 -> conv2(+BN) -> PLIF2 -> SEW merge
# ---------------------------------------------------------------------------
def _make_node_kernel(tap_shifts, T, HW, samples_per_block, n_in, cout):

    def kernel(sig_ref, mask_ref, *refs):
        x_refs = refs[:n_in]
        w1_ref, b1_ref, w2_ref, b2_ref, o_ref, acc_ref, s1_ref = refs[n_in:]

        masks = mask_ref[...]                                  # (9, Lblk) f32
        sigma1 = sig_ref[0]
        sigma2 = sig_ref[1]

        def conv_acc(w_ref, b_ref, x):
            """acc_ref <- bias + sum_k W_k @ (rolled & masked tap_k of x).
            x is bf16; weights bf16; f32 MXU accumulate; one tap per matmul
            keeps live vregs bounded (no big im2col concat)."""
            acc_ref[...] = jnp.broadcast_to(b_ref[...], acc_ref.shape)
            for k, s in enumerate(tap_shifts):
                if s == 0:                                     # centre tap
                    tap = x
                else:
                    tap = pltpu.roll(x, s, axis=1) * masks[k:k + 1, :].astype(x.dtype)
                acc_ref[...] += jnp.dot(w_ref[k], tap,
                                        preferred_element_type=jnp.float32)

        # conv1 over all edges / all time steps at once (edge gates are folded
        # into w1; inputs stay binary bf16, never summed in HBM).
        if n_in == 1:
            x_cat = x_refs[0][...]
        else:
            x_cat = jnp.concatenate([r[...] for r in x_refs], axis=0)
        conv_acc(w1_ref, b1_ref, x_cat)

        # PLIF1: recurrent only over t (per sample); T and samples_per_block
        # are small static ints, so unroll.
        for n in range(samples_per_block):
            v = jnp.zeros((cout, HW), jnp.float32)
            for t in range(T):
                lo = (n * T + t) * HW
                v = v + (acc_ref[:, lo:lo + HW] - v) * sigma1
                spk = v >= 1.0
                s1_ref[:, lo:lo + HW] = spk.astype(s1_ref.dtype)
                v = jnp.where(spk, 0.0, v)

        # conv2 on the in-VMEM spike map (never leaves VMEM).
        conv_acc(w2_ref, b2_ref, s1_ref[...])

        # PLIF2 + SEW merge; for binary spikes 1-(1-a)(1-b) == max(a, b).
        for n in range(samples_per_block):
            v = jnp.zeros((cout, HW), jnp.float32)
            for t in range(T):
                lo = (n * T + t) * HW
                v = v + (acc_ref[:, lo:lo + HW] - v) * sigma2
                spk = v >= 1.0
                o_ref[:, lo:lo + HW] = jnp.maximum(
                    s1_ref[:, lo:lo + HW], spk.astype(o_ref.dtype))
                v = jnp.where(spk, 0.0, v)

    return kernel


def node_forward(inputs, p, *, N, T, H, W, num_blocks=1):
    """Forward of one CogniSNN `Node` on lane-layout activations.

    inputs: list of (Cin_pad, N*T*H*W) bf16 arrays (one per in-edge).
    num_blocks: >1 splits samples over a "parallel" grid axis (set 2+ on v7x to
                use both TensorCores once N is large; 1 is best on v5e/v6e at
                tiny N).  Blocks always start at sample boundaries so the
                roll+mask boundary handling stays valid.
    Returns (Cout, N*T*H*W) bf16 binary spikes.
    """
    HW = H * W
    NTL = N * T * HW
    n_in = len(inputs)
    cin, cout = p["w1"].shape[2], p["w1"].shape[3]
    cin_p = _round_up(cin, 8)
    for x in inputs:
        assert x.shape == (cin_p, NTL), (x.shape, (cin_p, NTL))
    assert cout % 8 == 0 and p["w2"].shape[2] == cout
    assert N % num_blocks == 0
    blk_L = NTL // num_blocks
    samples_per_block = N // num_blocks
    assert blk_L % 128 == 0

    gates = jax.nn.sigmoid(p["edge_w"]) if n_in > 1 else None
    w1, b1 = _fold_conv_bn(p["w1"], p["gamma1"], p["beta1"], p["mean1"],
                           p["var1"], cin_pad=cin_p, gates=gates)
    w2, b2 = _fold_conv_bn(p["w2"], p["gamma2"], p["beta2"], p["mean2"],
                           p["var2"], cin_pad=cout)
    sigmas = jnp.stack([jax.nn.sigmoid(p["plif_w1"]),
                        jax.nn.sigmoid(p["plif_w2"])]).astype(jnp.float32)
    masks = _make_tap_masks(H, W, NTL)
    shifts = _tap_shifts(W, blk_L, jnp_like=_roll_is_jnp_like())

    cin_tot = n_in * cin_p
    kernel = _make_node_kernel(shifts, T, HW, samples_per_block, n_in, cout)

    x_specs = [pl.BlockSpec((cin_p, blk_L), lambda b: (0, b))
               for _ in range(n_in)]

    return pl.pallas_call(
        kernel,
        out_shape=jax.ShapeDtypeStruct((cout, NTL), ACT_DTYPE),
        grid=(num_blocks,),
        in_specs=[
            pl.BlockSpec(memory_space=pltpu.MemorySpace.SMEM),   # PLIF sigmas (2,)
            pl.BlockSpec((9, blk_L), lambda b: (0, b)),          # tap masks
            *x_specs,                                            # edge inputs
            pl.BlockSpec((9, cout, cin_tot), lambda b: (0, 0, 0)),  # w1 (BN+gates)
            pl.BlockSpec((cout, 1), lambda b: (0, 0)),              # b1
            pl.BlockSpec((9, cout, cout), lambda b: (0, 0, 0)),     # w2 (BN)
            pl.BlockSpec((cout, 1), lambda b: (0, 0)),              # b2
        ],
        out_specs=pl.BlockSpec((cout, blk_L), lambda b: (0, b)),
        scratch_shapes=[
            pltpu.VMEM((cout, blk_L), jnp.float32),              # conv accumulator
            pltpu.VMEM((cout, blk_L), ACT_DTYPE),                # conv1 spike map
        ],
        compiler_params=pltpu.CompilerParams(
            dimension_semantics=("parallel",)),
    )(sigmas, masks, *inputs, w1, b1, w2, b2)


def init_node_params(key, cin, cout, n_in):
    k = jax.random.split(key, 12)

    def conv_w(kk, ci):
        std = (2.0 / (9 * ci)) ** 0.5
        return std * jax.random.normal(kk, (3, 3, ci, cout), jnp.float32)

    def bn(kg, kb, km, kv):
        return (1.0 + 0.1 * jax.random.normal(kg, (cout,), jnp.float32),
                0.5 + 0.1 * jax.random.normal(kb, (cout,), jnp.float32),
                0.1 * jax.random.normal(km, (cout,), jnp.float32),
                1.0 + 0.3 * jax.random.uniform(kv, (cout,), jnp.float32))

    g1, b1, m1, v1 = bn(k[1], k[2], k[3], k[4])
    g2, b2, m2, v2 = bn(k[6], k[7], k[8], k[9])
    return {
        "w1": conv_w(k[0], cin),
        "gamma1": g1, "beta1": b1, "mean1": m1, "var1": v1,
        "w2": conv_w(k[5], cout),
        "gamma2": g2, "beta2": b2, "mean2": m2, "var2": v2,
        # MultiStepParametricLIFNode(init_tau=2.0): w = -log(tau-1) = 0.
        "plif_w1": jnp.zeros((), jnp.float32),
        "plif_w2": jnp.zeros((), jnp.float32),
        # nn.Parameter(torch.ones(1)) per in-edge.
        "edge_w": jnp.ones((n_in,), jnp.float32),
    }


# ---------------------------------------------------------------------------
# Pure-JAX references
# ---------------------------------------------------------------------------
def _ref_conv_plif_lane(x, w3d, bias, sigma, masks, shifts, *, T, N, HW, cout):
    """Pure-JAX mirror of the kernel's conv+PLIF (tap-split roll+mask im2col,
    f32 accumulate, PLIF over t)."""
    NTL = x.shape[1]
    y = jnp.broadcast_to(bias, (cout, NTL)).astype(jnp.float32)
    for k, s in enumerate(shifts):
        tap = x if s == 0 else (jnp.roll(x, s, axis=1)
                                * masks[k:k + 1, :].astype(x.dtype))
        y = y + jnp.dot(w3d[k], tap, preferred_element_type=jnp.float32,
                        precision=jax.lax.Precision.HIGHEST)
    y = y.reshape(cout, N, T, HW)
    v = jnp.zeros((cout, N, HW), jnp.float32)
    spikes = []
    for t in range(T):
        v = v + (y[:, :, t, :] - v) * sigma
        spk = v >= 1.0
        spikes.append(spk)
        v = jnp.where(spk, 0.0, v)
    return jnp.stack(spikes, axis=2).astype(x.dtype).reshape(cout, NTL)


def ref_node_forward_lane(inputs, p, *, N, T, H, W, wdtype):
    """Pure-JAX mirror of the Pallas Node kernel (same gate/BN folding, same
    tap decomposition).  wdtype=bf16 mirrors the kernel's arithmetic;
    wdtype=f32 gives an algorithm-only reference."""
    HW = H * W
    NTL = N * T * HW
    n_in = len(inputs)
    cout = p["w1"].shape[3]
    cin_p = inputs[0].shape[0]
    gates = jax.nn.sigmoid(p["edge_w"]) if n_in > 1 else None
    w1, b1 = _fold_conv_bn(p["w1"], p["gamma1"], p["beta1"], p["mean1"],
                           p["var1"], cin_pad=cin_p, gates=gates, dtype=wdtype)
    w2, b2 = _fold_conv_bn(p["w2"], p["gamma2"], p["beta2"], p["mean2"],
                           p["var2"], cin_pad=cout, dtype=wdtype)
    masks = _make_tap_masks(H, W, NTL)
    shifts = _tap_shifts(W, NTL, jnp_like=True)   # jnp.roll semantics
    x = inputs[0] if n_in == 1 else jnp.concatenate(inputs, axis=0)
    x = x.astype(wdtype)
    s1 = _ref_conv_plif_lane(x, w1, b1, jax.nn.sigmoid(p["plif_w1"]), masks,
                             shifts, T=T, N=N, HW=HW, cout=cout)
    s2 = _ref_conv_plif_lane(s1, w2, b2, jax.nn.sigmoid(p["plif_w2"]), masks,
                             shifts, T=T, N=N, HW=HW, cout=cout)
    return jnp.maximum(s1, s2)


def _ref_conv3x3_bn(x, w, gamma, beta, mean, var, eps=1e-5):
    y = jax.lax.conv_general_dilated(
        x, w, window_strides=(1, 1), padding=((1, 1), (1, 1)),
        dimension_numbers=("NCHW", "HWIO", "NCHW"),
        precision=jax.lax.Precision.HIGHEST)
    scale = gamma / jnp.sqrt(var + eps)
    return (y * scale[None, :, None, None]
            + (beta - mean * scale)[None, :, None, None])


def _ref_plif(y, plif_w):
    sigma = jax.nn.sigmoid(plif_w)

    def step(v, yt):
        v = v + (yt - v) * sigma
        s = (v >= 1.0).astype(yt.dtype)
        return v * (1.0 - s), s

    _, s = jax.lax.scan(step, jnp.zeros_like(y[0]), y)
    return s


def ref_node_forward(inputs, p):
    """Faithful f32 reference of the PyTorch Node (gated sum -> SEWBlock)."""
    if len(inputs) > 1:
        g = jax.nn.sigmoid(p["edge_w"])
        x = inputs[0] * g[0]
        for i in range(1, len(inputs)):
            x = x + inputs[i] * g[i]
    else:
        x = inputs[0]
    T, N, _, H, W = x.shape

    def conv_bn_plif(z, w, gamma, beta, mean, var, plif_w):
        y = _ref_conv3x3_bn(z.reshape(T * N, z.shape[2], H, W),
                            w, gamma, beta, mean, var)
        return _ref_plif(y.reshape(T, N, -1, H, W), plif_w)

    s1 = conv_bn_plif(x, p["w1"], p["gamma1"], p["beta1"], p["mean1"],
                      p["var1"], p["plif_w1"])
    s2 = conv_bn_plif(s1, p["w2"], p["gamma2"], p["beta2"], p["mean2"],
                      p["var2"], p["plif_w2"])
    return 1.0 - (1.0 - s1) * (1.0 - s2)


# TODO(synk): forward-only kernel; training-mode BatchNorm statistic updates
# and surrogate-gradient backward of the LIF neurons are not implemented.

if __name__ == "__main__":
    T, N, H, W = 4, 2, 16, 16
    in_channels, out_channels = 4, 16

    key = jax.random.PRNGKey(0)
    key, xk = jax.random.split(key)
    # SpikingJelly multi-step layout [T, N, C, H, W]; binary spike input.
    x_tnchw = (jax.random.uniform(xk, (T, N, in_channels, H, W)) < 0.5
               ).astype(jnp.float32)

    keys = jax.random.split(key, 3)
    p1 = init_node_params(keys[0], in_channels, out_channels, n_in=1)
    p2 = init_node_params(keys[1], out_channels, out_channels, n_in=1)
    p3 = init_node_params(keys[2], out_channels, out_channels, n_in=2)

    x0 = to_lane_layout(x_tnchw, cin_pad=_round_up(in_channels, 8))

    _roll_is_jnp_like()   # prime the pltpu.roll direction probe outside jit

    # Tiny DAG exercising both Node paths (in_degree == 1 and > 1):
    #   node1 <- input ; node2 <- node1 ; node3 <- {node1, node2}
    @jax.jit
    def run_dag(x0, p1, p2, p3):
        o1 = node_forward([x0], p1, N=N, T=T, H=H, W=W)
        o2 = node_forward([o1], p2, N=N, T=T, H=H, W=W)
        o3 = node_forward([o1, o2], p3, N=N, T=T, H=H, W=W)
        return o3

    o3 = jax.block_until_ready(run_dag(x0, p1, p2, p3))

    out = from_lane_layout(o3, N=N, T=T, H=H, W=W)
    assert out.shape == (T, N, out_channels, H, W)
    vals = jnp.asarray(out, jnp.float32)
    assert bool(jnp.all((vals == 0.0) | (vals == 1.0)))

    # Check 1: Pallas kernel vs a pure-JAX mirror of the same algorithm/dtypes.
    m1 = ref_node_forward_lane([x0], p1, N=N, T=T, H=H, W=W, wdtype=jnp.bfloat16)
    m2 = ref_node_forward_lane([m1], p2, N=N, T=T, H=H, W=W, wdtype=jnp.bfloat16)
    m3 = ref_node_forward_lane([m1, m2], p3, N=N, T=T, H=H, W=W,
                               wdtype=jnp.bfloat16)
    mism_kernel = float(jnp.mean(jnp.abs(jnp.asarray(o3, jnp.float32)
                                         - jnp.asarray(m3, jnp.float32))))
    assert mism_kernel < 0.02, f"kernel vs mirror spike mismatch {mism_kernel}"

    # Check 2: the roll+mask+fold algorithm (f32) vs the faithful f32
    # PyTorch-semantics reference (lax.conv + BN + PLIF scan + SEW merge).
    a1 = ref_node_forward_lane([x0], p1, N=N, T=T, H=H, W=W, wdtype=jnp.float32)
    a2 = ref_node_forward_lane([a1], p2, N=N, T=T, H=H, W=W, wdtype=jnp.float32)
    a3 = ref_node_forward_lane([a1, a2], p3, N=N, T=T, H=H, W=W,
                               wdtype=jnp.float32)
    r1 = ref_node_forward([x_tnchw], p1)
    r2 = ref_node_forward([r1], p2)
    r3 = ref_node_forward([r1, r2], p3)
    r3_lane = to_lane_layout(r3, dtype=jnp.float32)
    mism_algo = float(jnp.mean(jnp.abs(a3 - r3_lane)))
    assert mism_algo < 0.02, f"algorithm vs reference spike mismatch {mism_algo}"

    print("KERNEL_OK")
</pallas_src>

<mosaic_0001>
module attributes {stable_mosaic.version = 11 : i64} {
  func.func @probe(%arg0: memref<8x128xf32, #tpu.memory_space<vmem>>, %arg1: memref<8x128xf32, #tpu.memory_space<vmem>>) attributes {dimension_semantics = [], scalar_prefetch = 0 : i64, scratch_operands = 0 : i64, tpu.core_type = #tpu.core_type<tc>} {
    %c0 = arith.constant 0 : index
    %c0_0 = arith.constant 0 : index
    %0 = vector.load %arg0[%c0, %c0_0] : memref<8x128xf32, #tpu.memory_space<vmem>>, vector<8x128xf32>
    %c1_i32 = arith.constant 1 : i32
    %1 = tpu.dynamic_rotate %0 by %c1_i32 dim 1 : vector<8x128xf32>, i32 -> vector<8x128xf32>
    %c0_1 = arith.constant 0 : index
    %c0_2 = arith.constant 0 : index
    %2 = vector.load %arg1[%c0_1, %c0_2] : memref<8x128xf32, #tpu.memory_space<vmem>>, vector<8x128xf32>
    tpu.vector_store %arg1[%c0_1, %c0_2], %1 {strides = array<i32>} : memref<8x128xf32, #tpu.memory_space<vmem>>, vector<8x128xf32>,
    return
  }
}

</mosaic_0001>

<llo_original>
// kernel: tpu_custom_call.1
$region0: #{tpu_custom_call.1}
  #allocation0 [shape = 'u32[]', space=smem, size = 0x4, offset = 0x4, fixed_abs, tag = 'smem constant byte address 0x4 - core index']
  #allocation1 [shape = 'u32[144,128]{1,0:T(1,128)}', space=vmem, size = 0x12000, scoped, tag = 'internal scratch']
  %s0 = inlined_call_operand.hbm [shape: f32[8,128], index: 0, kind: input, shape index: {}]
  %s1 = inlined_call_operand.hbm [shape: f32[8,128], index: 1, kind: output, shape index: {}]
  %s2 = sld [smem:[#allocation0]]
  $region18: #{tpu_custom_call.1} parent=0
    _
  %s4 = ssub.s32 1, %s2
  %s5 = scalar_select 0, %s4, %s2
  $region1: #{tpu_custom_call.1} parent=0
    #allocation2 [shape = 'u8[4096]{0}', space=vmem, size = 0x1000, scoped, tag = 'input window, operand 0, single buffered']
    #allocation3 [shape = 's32[1]{0}', space=sflag, size = 0x4, scoped, tag = 'scoped memory for tpu_custom_call.1']
    #allocation4 [shape = 's32[1]{0}', space=sflag, size = 0x4, scoped, tag = 'scoped memory for tpu_custom_call.1']
    #allocation5 [shape = 'u8[4096]{0}', space=vmem, size = 0x1000, scoped, tag = 'output window, operand 0, single buffered']
    %6 = vsyncpa [#allocation3], 0
    %7 = vsyncpa [#allocation4], 0
    // Predicated region
    $region2: #{tpu_custom_call.1} parent=1 // pred_check
      _
    $region3: #{tpu_custom_call.1} parent=1 // pred_check_branch
      %9 = sbr.rel (0) target = $region5
    $region4: #{tpu_custom_call.1} parent=1 // pred_region
      %s11 = ssub.s32 128, 128
      %12 = vsyncadd [#allocation3], %s11
      %s14 = sshll.u32 [#allocation2], 4
      %s15 = int_to_ptr.vmem [resolvable:$true] %s14
      %17 = dma.hbm_to_vmem [thread:$0]  %s0, 128, %s15, [#allocation3]
    $region5: #{tpu_custom_call.1} parent=1 // pred_fallthru
      _
    // Predicated region
    $region6: #{tpu_custom_call.1} parent=1 // pred_check
      _
    $region7: #{tpu_custom_call.1} parent=1 // pred_check_branch
      %19 = sbr.rel (0) target = $region9
    $region8: #{tpu_custom_call.1} parent=1 // pred_region
      %20 = dma.done [#allocation3], 128
    $region9: #{tpu_custom_call.1} parent=1 // pred_fallthru
      _
    %v21 = vld [vmem:[#allocation2] sm:$0xff]
    %22 = vrot.lane.b32.xlu0 %v21, 1
    %v23 = vpop.permute.xlu0 %22
    %24 = vst [vmem:[#allocation5] sm:$0xff] %v23
    // Predicated region
    $region10: #{tpu_custom_call.1} parent=1 // pred_check
      _
    $region11: #{tpu_custom_call.1} parent=1 // pred_check_branch
      %26 = sbr.rel (0) target = $region13
    $region12: #{tpu_custom_call.1} parent=1 // pred_region
      %s28 = ssub.s32 128, 128
      %29 = vsyncadd [#allocation4], %s28
      %s31 = sshll.u32 [#allocation5], 4
      %s32 = int_to_ptr.vmem [resolvable:$true] %s31
      %34 = dma.vmem_to_hbm [thread:$0]  %s32, 128, %s1, [#allocation4]
    $region13: #{tpu_custom_call.1} parent=1 // pred_fallthru
      _
    // Predicated region
    $region14: #{tpu_custom_call.1} parent=1 // pred_check
      _
    $region15: #{tpu_custom_call.1} parent=1 // pred_check_branch
      %36 = sbr.rel (0) target = $region17
    $region16: #{tpu_custom_call.1} parent=1 // pred_region
      %37 = dma.done [#allocation4], 128
    $region17: #{tpu_custom_call.1} parent=1 // pred_fallthru
      _
    %38 = vsyncpa [#allocation3], 1
    %39 = vsyncpa [#allocation4], 1

</llo_original>
